<compile_context>
chip_gen: v6e
topology: v6e:2x2x1
jax: 0.10.0
libtpu: 0.0.40
codegen_flags: <defaults>
</compile_context>

<pallas_src>
import jax
import jax.numpy as jnp
from jax.experimental import pallas as pl
from jax.experimental.pallas import tpu as pltpu


def _recon_mse_kernel(x_ref, y_ref, std_ref, o_ref, acc_ref):
    """One (row_tile, lane_tile) block of the (N*C, H*W) slab.

    x_ref, y_ref : (Rt, Lt) image tiles (any float dtype)
    std_ref      : (Rt, 1)  per-row dataset std (mean cancels for MSE)
    o_ref        : (8, 128) per-row-block partial squared-error sums
    acc_ref      : (Rt, 128) f32 running lane-group partial sums (VMEM scratch)
    """
    j = pl.program_id(1)

    @pl.when(j == 0)
    def _():
        acc_ref[...] = jnp.zeros_like(acc_ref)

    s = std_ref[...]                                      # (Rt, 1) f32
    d = (x_ref[...].astype(jnp.float32)
         - y_ref[...].astype(jnp.float32)) * s            # denorm diff
    sq = d * d                                            # (Rt, Lt)

    Rt = acc_ref.shape[0]
    Lt = sq.shape[1]

    # Lane-group-wise accumulation: pure VPU adds, no per-step XLU reduction,
    # no serializing scalar read-modify-write.
    acc = acc_ref[...]
    for g in range(Lt // 128):
        acc = acc + sq[:, g * 128:(g + 1) * 128]
    acc_ref[...] = acc

    @pl.when(j == pl.num_programs(1) - 1)
    def _():
        a = acc_ref[...]
        part = a[0:8, :]
        for gg in range(1, Rt // 8):                      # fold sublane groups
            part = part + a[gg * 8:(gg + 1) * 8, :]
        o_ref[...] = part


def _round_up(v, m):
    return (v + m - 1) // m * m


def reconstruction_metric(x, y, mean=None, std=None,
                          max_block_bytes=2 * 1024 * 1024):
    """Pallas implementation of ReconstructionMetric.forward with an MSE metric.

    x, y : (N, C, H, W) arrays (C == 1 or 3), PyTorch NCHW layout.
    Returns a python float (mirrors `.item()`).
    """
    if mean is None:
        mean = [0.0]
    if std is None:
        std = [1.0]
    mean = list(mean)
    std = list(std)
    if len(mean) == 1:
        mean = mean * 3
    if len(std) == 1:
        std = std * 3
    if len(mean) != 3 or len(std) != 3:
        raise ValueError("mean/std must have length 1 or 3")
    del mean  # mean cancels exactly in (x_d - y_d) for the MSE metric.

    N, C, H, W = x.shape
    assert y.shape[0] == N and y.shape[2:] == (H, W)

    if C == 1 and y.shape[1] == 1:
        # Identical-channel repeat == scaling squared error by mean(std_c^2).
        # Avoids materializing a 3x larger array (3x HBM traffic).
        std_eff = float(sum(float(s) ** 2 for s in std) / 3.0) ** 0.5
        row_std = jnp.full((N,), std_eff, dtype=jnp.float32)
        Cc = 1
    else:
        if x.shape[1] == 1:
            x = jnp.tile(x, (1, 3, 1, 1))
        if y.shape[1] == 1:
            y = jnp.tile(y, (1, 3, 1, 1))
        Cc = x.shape[1]
        assert Cc == 3 and y.shape[1] == 3, "expected 1 or 3 channels"
        row_std = jnp.tile(jnp.asarray(std, jnp.float32), (N,))

    R = N * Cc
    L = H * W
    x2 = x.reshape(R, L)
    y2 = y.reshape(R, L)

    # Zero-pad to (8, 128) alignment; padded diffs contribute 0 to the sum.
    Rp = _round_up(R, 8)
    Lp = _round_up(L, 128)
    if Rp != R or Lp != L:
        x2 = jnp.pad(x2, ((0, Rp - R), (0, Lp - L)))
        y2 = jnp.pad(y2, ((0, Rp - R), (0, Lp - L)))
    if Rp != R:
        row_std = jnp.pad(row_std, (0, Rp - R))
    row_std = row_std.reshape(Rp, 1)

    # Row tile: multiple of 8 that divides Rp, capped at 128 rows.
    if Rp <= 128:
        Rt = Rp
    else:
        Rt = 8
        for cand in range(128, 0, -8):
            if Rp % cand == 0:
                Rt = cand
                break

    # Lane tile: largest multiple of 128 dividing Lp within the block budget.
    elem_bytes = jnp.dtype(x2.dtype).itemsize
    budget_lanes = max(128, int(max_block_bytes) // (Rt * elem_bytes))
    n_groups = Lp // 128
    g = max(1, min(n_groups, budget_lanes // 128))
    while n_groups % g != 0:
        g -= 1
    Lt = g * 128

    grid = (Rp // Rt, Lp // Lt)
    n_row_blocks = grid[0]

    out = pl.pallas_call(
        _recon_mse_kernel,
        out_shape=jax.ShapeDtypeStruct((n_row_blocks * 8, 128), jnp.float32),
        grid_spec=pltpu.PrefetchScalarGridSpec(
            num_scalar_prefetch=0,
            grid=grid,
            in_specs=[
                pl.BlockSpec((Rt, Lt), lambda i, j: (i, j)),   # x tile
                pl.BlockSpec((Rt, Lt), lambda i, j: (i, j)),   # y tile
                pl.BlockSpec((Rt, 1), lambda i, j: (i, 0)),    # per-row std
            ],
            out_specs=pl.BlockSpec((8, 128), lambda i, j: (i, 0)),
            scratch_shapes=[pltpu.VMEM((Rt, 128), jnp.float32)],
        ),
        compiler_params=pltpu.CompilerParams(
            dimension_semantics=("parallel", "arbitrary")),
    )(x2, y2, row_std)

    mse = jnp.sum(out) / float(R * L)
    return float(jax.block_until_ready(mse))


def _reference(x, y, mean, std):
    """Pure-JAX reference mirroring the PyTorch module (repeat + denorm + MSE)."""
    mean = list(mean)
    std = list(std)
    if len(mean) == 1:
        mean = mean * 3
    if len(std) == 1:
        std = std * 3
    if x.shape[1] == 1:
        x = jnp.tile(x, (1, 3, 1, 1))
    if y.shape[1] == 1:
        y = jnp.tile(y, (1, 3, 1, 1))
    m = jnp.asarray(mean, jnp.float32).reshape(1, 3, 1, 1)
    s = jnp.asarray(std, jnp.float32).reshape(1, 3, 1, 1)
    xd = x.astype(jnp.float32) * s + m
    yd = y.astype(jnp.float32) * s + m
    return float(jnp.mean((xd - yd) ** 2))


if __name__ == "__main__":
    key = jax.random.PRNGKey(0)
    mean = [0.485, 0.456, 0.406]
    std = [0.229, 0.224, 0.225]

    # (shape, max_block_bytes override) — the last case forces a multi-block
    # 2-D grid to exercise the accumulate/epilogue path at small size.
    cases = [
        ((2, 1, 16, 16), None),       # single-channel path (no 3x repeat)
        ((2, 3, 16, 16), None),       # 3-channel, lane-aligned
        ((2, 3, 10, 10), None),       # H*W not a multiple of 128 -> padded
        ((48, 3, 16, 16), 32 * 1024), # multiple row and lane blocks
    ]

    for shape, blk in cases:
        k1, k2, key = jax.random.split(key, 3)
        x = jax.random.normal(k1, shape, dtype=jnp.float32)
        y = jax.random.normal(k2, shape, dtype=jnp.float32)
        kwargs = {} if blk is None else {"max_block_bytes": blk}
        got = reconstruction_metric(x, y, mean, std, **kwargs)
        want = _reference(x, y, mean, std)
        assert abs(got - want) <= 1e-5 * max(1.0, abs(want)), (shape, got, want)

    print("KERNEL_OK")
</pallas_src>

<mosaic_0001>
module attributes {stable_mosaic.version = 11 : i64} {
  func.func @_recon_mse_kernel(%arg0: i32, %arg1: i32, %arg2: memref<8x256xf32, #tpu.memory_space<vmem>>, %arg3: memref<8x256xf32, #tpu.memory_space<vmem>>, %arg4: memref<8x1xf32, #tpu.memory_space<vmem>>, %arg5: memref<8x128xf32, #tpu.memory_space<vmem>>, %arg6: memref<8x128xf32, #tpu.memory_space<vmem>>) attributes {dimension_semantics = [#tpu.dimension_semantics<parallel>, #tpu.dimension_semantics<arbitrary>], iteration_bounds = array<i64: 1, 1>, scalar_prefetch = 0 : i64, scratch_operands = 1 : i64, tpu.core_type = #tpu.core_type<tc>, window_params = [{transform_indices = @transform_0, window_bounds = array<i64: 8, 256>}, {transform_indices = @transform_1, window_bounds = array<i64: 8, 256>}, {transform_indices = @transform_2, window_bounds = array<i64: 8, 1>}, {transform_indices = @transform_3, window_bounds = array<i64: 8, 128>}]} {
    %c0_i32 = arith.constant 0 : i32
    %0 = arith.cmpi eq, %arg1, %c0_i32 : i32
    %1 = arith.extui %0 : i1 to i32
    %c0_i32_0 = arith.constant 0 : i32
    %2 = arith.cmpi ne, %1, %c0_i32_0 : i32
    scf.if %2 {
      %cst = arith.constant 0.000000e+00 : f32
      %19 = vector.broadcast %cst : f32 to vector<8x128xf32>
      %c0_12 = arith.constant 0 : index
      %c0_13 = arith.constant 0 : index
      %20 = vector.load %arg6[%c0_12, %c0_13] : memref<8x128xf32, #tpu.memory_space<vmem>>, vector<8x128xf32>
      tpu.vector_store %arg6[%c0_12, %c0_13], %19 {strides = array<i32>} : memref<8x128xf32, #tpu.memory_space<vmem>>, vector<8x128xf32>,
    } else {
    }
    %c0 = arith.constant 0 : index
    %c0_1 = arith.constant 0 : index
    %3 = vector.load %arg4[%c0, %c0_1] : memref<8x1xf32, #tpu.memory_space<vmem>>, vector<8x1xf32>
    %c0_2 = arith.constant 0 : index
    %c0_3 = arith.constant 0 : index
    %4 = vector.load %arg2[%c0_2, %c0_3] : memref<8x256xf32, #tpu.memory_space<vmem>>, vector<8x256xf32>
    %c0_4 = arith.constant 0 : index
    %c0_5 = arith.constant 0 : index
    %5 = vector.load %arg3[%c0_4, %c0_5] : memref<8x256xf32, #tpu.memory_space<vmem>>, vector<8x256xf32>
    %6 = arith.subf %4, %5 : vector<8x256xf32>
    %7 = vector.broadcast %3 : vector<8x1xf32> to vector<8x256xf32>
    %8 = arith.mulf %6, %7 : vector<8x256xf32>
    %9 = arith.mulf %8, %8 : vector<8x256xf32>
    %c0_6 = arith.constant 0 : index
    %c0_7 = arith.constant 0 : index
    %10 = vector.load %arg6[%c0_6, %c0_7] : memref<8x128xf32, #tpu.memory_space<vmem>>, vector<8x128xf32>
    %11 = vector.extract_strided_slice %9 {offsets = [0, 0], sizes = [8, 128], strides = [1, 1]} : vector<8x256xf32> to vector<8x128xf32>
    %12 = arith.addf %10, %11 : vector<8x128xf32>
    %13 = vector.extract_strided_slice %9 {offsets = [0, 128], sizes = [8, 128], strides = [1, 1]} : vector<8x256xf32> to vector<8x128xf32>
    %14 = arith.addf %12, %13 : vector<8x128xf32>
    %c0_8 = arith.constant 0 : index
    %c0_9 = arith.constant 0 : index
    %15 = vector.load %arg6[%c0_8, %c0_9] : memref<8x128xf32, #tpu.memory_space<vmem>>, vector<8x128xf32>
    tpu.vector_store %arg6[%c0_8, %c0_9], %14 {strides = array<i32>} : memref<8x128xf32, #tpu.memory_space<vmem>>, vector<8x128xf32>,
    %c0_i32_10 = arith.constant 0 : i32
    %16 = arith.cmpi eq, %arg1, %c0_i32_10 : i32
    %17 = arith.extui %16 : i1 to i32
    %c0_i32_11 = arith.constant 0 : i32
    %18 = arith.cmpi ne, %17, %c0_i32_11 : i32
    scf.if %18 {
      %c0_12 = arith.constant 0 : index
      %c0_13 = arith.constant 0 : index
      %19 = vector.load %arg6[%c0_12, %c0_13] : memref<8x128xf32, #tpu.memory_space<vmem>>, vector<8x128xf32>
      %c0_14 = arith.constant 0 : index
      %c0_15 = arith.constant 0 : index
      %20 = vector.load %arg5[%c0_14, %c0_15] : memref<8x128xf32, #tpu.memory_space<vmem>>, vector<8x128xf32>
      tpu.vector_store %arg5[%c0_14, %c0_15], %19 {strides = array<i32>} : memref<8x128xf32, #tpu.memory_space<vmem>>, vector<8x128xf32>,
    } else {
    }
    return
  }
  func.func @transform_0(%arg0: i32, %arg1: i32) -> (i32, i32) {
    %c0_i32 = arith.constant 0 : i32
    return %arg0, %arg1 : i32, i32
  }
  func.func @transform_1(%arg0: i32, %arg1: i32) -> (i32, i32) {
    %c0_i32 = arith.constant 0 : i32
    return %arg0, %arg1 : i32, i32
  }
  func.func @transform_2(%arg0: i32, %arg1: i32) -> (i32, i32) {
    %c0_i32 = arith.constant 0 : i32
    %c0_i32_0 = arith.constant 0 : i32
    return %arg0, %c0_i32 : i32, i32
  }
  func.func @transform_3(%arg0: i32, %arg1: i32) -> (i32, i32) {
    %c0_i32 = arith.constant 0 : i32
    %c0_i32_0 = arith.constant 0 : i32
    return %arg0, %c0_i32 : i32, i32
  }
}

</mosaic_0001>

<llo_original>
// kernel: tpu_custom_call.1
$region0: #{tpu_custom_call.1}
  #allocation0 [shape = 'u32[]', space=smem, size = 0x4, offset = 0x4, fixed_abs, tag = 'smem constant byte address 0x4 - core index']
  #allocation1 [shape = 'u32[144,128]{1,0:T(1,128)}', space=vmem, size = 0x12000, scoped, tag = 'internal scratch']
  #allocation2 [shape = 'f32[8,128]{1,0:T(8,128)}', space=vmem, size = 0x1000, scoped, tag = 'scratch operand']
  %s0 = inlined_call_operand.hbm [shape: f32[8,256], index: 0, kind: input, shape index: {}]
  %s1 = inlined_call_operand.hbm [shape: f32[8,256], index: 1, kind: input, shape index: {}]
  %s2 = inlined_call_operand.vmem [shape: f32[8,1], index: 2, kind: input, shape index: {}]
  %s3 = inlined_call_operand.hbm [shape: f32[8,128], index: 3, kind: output, shape index: {}]
  %s4 = sld [smem:[#allocation0]]
  $region38: #{tpu_custom_call.1} parent=0
    _
  %s6 = ssub.s32 1, %s4
  %s7 = scalar_select 0, %s6, %s4
  $region1: #{tpu_custom_call.1} parent=0
    #allocation3 [shape = 'u8[8192]{0}', space=vmem, size = 0x2000, scoped, tag = 'input window, operand 0, single buffered']
    #allocation4 [shape = 's32[1]{0}', space=sflag, size = 0x4, scoped, tag = 'scoped memory for tpu_custom_call.1']
    #allocation5 [shape = 's32[1]{0}', space=sflag, size = 0x4, scoped, tag = 'scoped memory for tpu_custom_call.1']
    #allocation6 [shape = 'u8[8192]{0}', space=vmem, size = 0x2000, scoped, tag = 'input window, operand 1, single buffered']
    #allocation7 [shape = 's32[1]{0}', space=sflag, size = 0x4, scoped, tag = 'scoped memory for tpu_custom_call.1']
    #allocation8 [shape = 'u8[4096]{0}', space=vmem, size = 0x1000, scoped, tag = 'output window, operand 0, single buffered']
    %8 = vsyncpa [#allocation4], 0
    %9 = vsyncpa [#allocation7], 0
    %10 = vsyncpa [#allocation5], 0
    // Predicated region
    $region2: #{tpu_custom_call.1} parent=1 // pred_check
      _
    $region3: #{tpu_custom_call.1} parent=1 // pred_check_branch
      %12 = sbr.rel (0) target = $region5
    $region4: #{tpu_custom_call.1} parent=1 // pred_region
      %s14 = ssub.s32 256, 256
      %15 = vsyncadd [#allocation4], %s14
      %s17 = sshll.u32 [#allocation3], 4
      %s18 = int_to_ptr.vmem [resolvable:$true] %s17
      %20 = dma.hbm_to_vmem [thread:$0]  %s0, 256, %s18, [#allocation4]
    $region5: #{tpu_custom_call.1} parent=1 // pred_fallthru
      _
    // Predicated region
    $region6: #{tpu_custom_call.1} parent=1 // pred_check
      _
    $region7: #{tpu_custom_call.1} parent=1 // pred_check_branch
      %22 = sbr.rel (0) target = $region9
    $region8: #{tpu_custom_call.1} parent=1 // pred_region
      %s24 = ssub.s32 256, 256
      %25 = vsyncadd [#allocation7], %s24
      %s27 = sshll.u32 [#allocation6], 4
      %s28 = int_to_ptr.vmem [resolvable:$true] %s27
      %30 = dma.hbm_to_vmem [thread:$0]  %s1, 256, %s28, [#allocation7]
    $region9: #{tpu_custom_call.1} parent=1 // pred_fallthru
      _
    // Predicated region
    $region10: #{tpu_custom_call.1} parent=1 // pred_check
      _
    $region11: #{tpu_custom_call.1} parent=1 // pred_check_branch
      %32 = sbr.rel (0) target = $region13
    $region12: #{tpu_custom_call.1} parent=1 // pred_region
      _
    $region13: #{tpu_custom_call.1} parent=1 // pred_fallthru
      _
    // Predicated region
    $region14: #{tpu_custom_call.1} parent=1 // pred_check
      _
    $region15: #{tpu_custom_call.1} parent=1 // pred_check_branch
      %34 = sbr.rel (0) target = $region17
    $region16: #{tpu_custom_call.1} parent=1 // pred_region
      %35 = dma.done [#allocation4], 256
    $region17: #{tpu_custom_call.1} parent=1 // pred_fallthru
      _
    // Predicated region
    $region18: #{tpu_custom_call.1} parent=1 // pred_check
      _
    $region19: #{tpu_custom_call.1} parent=1 // pred_check_branch
      %37 = sbr.rel (0) target = $region21
    $region20: #{tpu_custom_call.1} parent=1 // pred_region
      %38 = dma.done [#allocation7], 256
    $region21: #{tpu_custom_call.1} parent=1 // pred_fallthru
      _
    %p39 = scmp.eq.s32.totalorder 0, 0
    // Predicated region
    $region22: #{tpu_custom_call.1} parent=1 // pred_check
      %p40 = pneg %p39
    $region23: #{tpu_custom_call.1} parent=1 // pred_check_branch
      %42 = sbr.rel (%p40) target = $region25
    $region24: #{tpu_custom_call.1} parent=1 // pred_region
      %43 = vst [vmem:[#allocation2] sm:$0xff] 0.0
    $region25: #{tpu_custom_call.1} parent=1 // pred_fallthru
      _
    %v44 = vld [vmem:[%s2] sm:$0xff]
    %v45 = vld [vmem:[#allocation3] sm:$0xff]
    %v46 = vld [vmem:[#allocation3 + $0x8] sm:$0xff]
    %v47 = vld [vmem:[#allocation6] sm:$0xff]
    %v48 = vld [vmem:[#allocation6 + $0x8] sm:$0xff]
    %v49 = vsub.f32 %v45, %v47
    %v50 = vsub.f32 %v46, %v48
    %52 = vset.pattern.permute.xlu0 0
    %53 = vperm.xlu0 %52, %v44
    %v54 = vpop.permute.xlu0 %53
    %v56 = vmul.f32 %v49, %v54
    %v57 = vmul.f32 %v50, %v54
    %v58 = vmul.f32 %v56, %v56
    %v59 = vmul.f32 %v57, %v57
    %v60 = vld [vmem:[#allocation2] sm:$0xff]
    %v61 = vadd.f32 %v60, %v58
    %v62 = vadd.f32 %v61, %v59
    %63 = vst [vmem:[#allocation2] sm:$0xff] %v62
    // Predicated region
    $region26: #{tpu_custom_call.1} parent=1 // pred_check
      %p64 = pneg %p39
    $region27: #{tpu_custom_call.1} parent=1 // pred_check_branch
      %66 = sbr.rel (%p64) target = $region29
    $region28: #{tpu_custom_call.1} parent=1 // pred_region
      %v67 = vld [vmem:[#allocation2] sm:$0xff]
      %68 = vst [vmem:[#allocation8] sm:$0xff] %v67
    $region29: #{tpu_custom_call.1} parent=1 // pred_fallthru
      _
    // Predicated region
    $region30: #{tpu_custom_call.1} parent=1 // pred_check
      _
    $region31: #{tpu_custom_call.1} parent=1 // pred_check_branch
      %70 = sbr.rel (0) target = $region33
    $region32: #{tpu_custom_call.1} parent=1 // pred_region
      %s72 = ssub.s32 128, 128
      %73 = vsyncadd [#allocation5], %s72
      %s75 = sshll.u32 [#allocation8], 4
      %s76 = int_to_ptr.vmem [resolvable:$true] %s75
      %78 = dma.vmem_to_hbm [thread:$0]  %s76, 128, %s3, [#allocation5]
    $region33: #{tpu_custom_call.1} parent=1 // pred_fallthru
      _
    // Predicated region
    $region34: #{tpu_custom_call.1} parent=1 // pred_check
      _
    $region35: #{tpu_custom_call.1} parent=1 // pred_check_branch
      %80 = sbr.rel (0) target = $region37
    $region36: #{tpu_custom_call.1} parent=1 // pred_region
      %81 = dma.done [#allocation5], 128
    $region37: #{tpu_custom_call.1} parent=1 // pred_fallthru
      _
    %82 = vsyncpa [#allocation4], 1
    %83 = vsyncpa [#allocation7], 1
    %84 = vsyncpa [#allocation5], 1

</llo_original>
